<compile_context>
chip_gen: v7x
topology: tpu7x:2x2x1
jax: 0.10.0
libtpu: 0.0.40
codegen_flags: <defaults>
</compile_context>

<pallas_src>
import math

import jax
import jax.numpy as jnp
from jax.experimental import pallas as pl
from jax.experimental.pallas import tpu as pltpu


def _round_up(a: int, b: int) -> int:
    return -(-a // b) * b


# sublane multiple per element size (sub-32-bit dtypes pack along sublanes)
_SUBLANES = {4: 8, 2: 16, 1: 32}


def gaussian_taps_1d(kernel_size: int, sigma: float):
    """1-D taps using the PyTorch module's formula
         1/(std*sqrt(2*pi)) * exp(-((x - mean) / (2*std))**2),
       then normalized.  NOTE: the denominator is 2*sigma (not 2*sigma**2), so
       sigma does NOT have standard-Gaussian semantics — this intentionally
       replicates the module.  The module's normalized 2-D kernel equals the
       outer product of these normalized 1-D taps, so the separable two-pass
       computation below is exact."""
    mean = (kernel_size - 1) / 2.0
    taps = [
        1.0 / (sigma * math.sqrt(2.0 * math.pi))
        * math.exp(-(((i - mean) / (2.0 * sigma)) ** 2))
        for i in range(kernel_size)
    ]
    s = sum(taps)
    return [t / s for t in taps]


def _vmem_budget_bytes() -> int:
    """Per-kernel VMEM budget: ~3/4 of physical VMEM, capped at 96 MiB.
    v5e/v6e (128 MiB) -> 96 MiB; v7x (64 MiB) -> 48 MiB; unknown -> 48 MiB."""
    phys = 64 << 20
    try:
        phys = int(pltpu.get_tpu_info().vmem_capacity_bytes)
    except Exception:
        pass
    return min((phys * 3) // 4, 96 << 20)


# ---------------------------------------------------------------------------
# Kernels (taps baked in as compile-time constants; f32 accumulation).
# ---------------------------------------------------------------------------
def _make_kernel_nchw(taps, K: int, Ho: int, Wo: int):
    taps = [float(t) for t in taps]

    def kernel(x_ref, o_ref):
        # x_ref: (nblk, H, W) ; o_ref: (nblk, Ho, Wo)
        # Horizontal (lane-axis) pass; the f32 upcast is fused per tap slice so
        # we never materialize a full-block f32 copy of the input.
        h = taps[0] * x_ref[:, :, 0:Wo].astype(jnp.float32)
        for dj in range(1, K):
            h = h + taps[dj] * x_ref[:, :, dj:dj + Wo].astype(jnp.float32)
        # Vertical (sublane-axis) pass.
        v = taps[0] * h[:, 0:Ho, :]
        for di in range(1, K):
            v = v + taps[di] * h[:, di:di + Ho, :]
        o_ref[...] = v.astype(o_ref.dtype)

    return kernel


def _make_kernel_channels_last(taps, K: int, Ho: int, Wo: int):
    taps = [float(t) for t in taps]

    def kernel(x_ref, o_ref):
        # x_ref: (H, W, nblk) ; o_ref: (Ho, Wo, nblk).  Planes live on the lane
        # axis -> full lane utilization and lane-dense stores when nblk is a
        # multiple of 128; taps broadcast along lanes for free and the spatial
        # shifts are sublane / leading-axis slices (no lane realignment).
        h = taps[0] * x_ref[:, 0:Wo, :].astype(jnp.float32)
        for dj in range(1, K):
            h = h + taps[dj] * x_ref[:, dj:dj + Wo, :].astype(jnp.float32)
        v = taps[0] * h[0:Ho, :, :]
        for di in range(1, K):
            v = v + taps[di] * h[di:di + Ho, :, :]
        o_ref[...] = v.astype(o_ref.dtype)

    return kernel


# ---------------------------------------------------------------------------
# Block sizing from the padded VMEM footprint (in/out double-buffered blocks
# plus ~3 full-block f32 temporaries).
# ---------------------------------------------------------------------------
def _nchw_planes_per_block(H, W, Ho, Wo, itemsize, budget):
    sub = _SUBLANES.get(itemsize, 8)
    in_p = _round_up(H, sub) * _round_up(W, 128) * itemsize
    out_p = _round_up(Ho, sub) * _round_up(Wo, 128) * itemsize
    tmp_p = 3 * _round_up(H, 8) * _round_up(W, 128) * 4      # f32 h/v temps + slack
    per_plane = 2 * (in_p + out_p) + tmp_p                    # 2x: double buffering
    return max(1, budget // per_plane)


def _cl_groups_per_block(H, W, Ho, Wo, itemsize, budget):
    sub = _SUBLANES.get(itemsize, 8)
    in_g = H * _round_up(W, sub) * 128 * itemsize
    out_g = Ho * _round_up(Wo, sub) * 128 * itemsize
    tmp_g = 3 * H * _round_up(W, 8) * 128 * 4
    per_group = 2 * (in_g + out_g) + tmp_g
    return max(1, budget // per_group)


# ---------------------------------------------------------------------------
# Wrapper
# ---------------------------------------------------------------------------
def gaussian_smoothing(x, kernel_size: int = 3, sigma: float = 0.5,
                       layout: str = "auto"):
    """x: (B, C, H, W). Depthwise valid Gaussian conv, matching
    F.conv2d(x, weight, groups=C) of the PyTorch module.
    Returns (B, C, H-K+1, W-K+1), same dtype as x."""
    B, C, H, W = x.shape
    K = int(kernel_size)
    Ho, Wo = H - K + 1, W - K + 1
    N = B * C
    itemsize = x.dtype.itemsize

    taps = gaussian_taps_1d(K, float(sigma))
    budget = _vmem_budget_bytes()

    if layout == "auto":
        # Narrow planes leave most of the 128 lanes dead in NCHW; if there are
        # enough planes to fill the lane axis, go channels-last instead.
        layout = "channels_last" if (Wo < 128 and N >= 128) else "nchw"

    cost = pl.CostEstimate(
        flops=2 * (2 * K - 1) * N * Ho * Wo,
        transcendentals=0,
        bytes_accessed=N * (H * W + Ho * Wo) * itemsize,
    )
    cparams = pltpu.CompilerParams(
        dimension_semantics=("parallel",),
        vmem_limit_bytes=budget,
    )

    # TODO(synk): for huge planes where even one plane / one 128-lane group
    # exceeds the VMEM budget, add row-strip tiling with a K-1 halo along H.
    # TODO(synk): on v7x, push the two tap passes onto the MXU as banded matmuls
    # (or run the horizontal pass in packed bf16) to relieve the VALU; kept as
    # f32 VPU passes here since v5e has no bf16 VPU/EUP.

    if layout == "nchw":
        x3 = x.reshape(N, H, W)
        nblk = min(_nchw_planes_per_block(H, W, Ho, Wo, itemsize, budget), N)
        if N > 1:
            nblk = min(nblk, pl.cdiv(N, 2))   # >= 2 grid steps -> both v7x TCs busy
        nblk = pl.cdiv(N, pl.cdiv(N, nblk))   # balance blocks (avoid tiny tail)
        grid = (pl.cdiv(N, nblk),)
        out3 = pl.pallas_call(
            _make_kernel_nchw(taps, K, Ho, Wo),
            out_shape=jax.ShapeDtypeStruct((N, Ho, Wo), x.dtype),
            grid=grid,
            in_specs=[pl.BlockSpec((nblk, H, W), lambda n: (n, 0, 0))],
            out_specs=pl.BlockSpec((nblk, Ho, Wo), lambda n: (n, 0, 0)),
            compiler_params=cparams,
            cost_estimate=cost,
        )(x3)
        return out3.reshape(B, C, Ho, Wo)

    # ---- channels-last: planes on the lane axis ----
    x_cl = x.reshape(N, H, W).transpose(1, 2, 0)   # (H, W, N)
    if N < 128:
        nblk = N   # full last dim (satisfies the (8,128) rule via full extent)
    else:
        groups = _cl_groups_per_block(H, W, Ho, Wo, itemsize, budget)
        total_groups = pl.cdiv(N, 128)
        if total_groups > 1:
            groups = min(groups, pl.cdiv(total_groups, 2))   # feed both v7x TCs
        nblk = max(1, min(groups, total_groups)) * 128
    grid = (pl.cdiv(N, nblk),)
    out_cl = pl.pallas_call(
        _make_kernel_channels_last(taps, K, Ho, Wo),
        out_shape=jax.ShapeDtypeStruct((Ho, Wo, N), x.dtype),
        grid=grid,
        in_specs=[pl.BlockSpec((H, W, nblk), lambda n: (0, 0, n))],
        out_specs=pl.BlockSpec((Ho, Wo, nblk), lambda n: (0, 0, n)),
        compiler_params=cparams,
        cost_estimate=cost,
    )(x_cl)
    return out_cl.transpose(2, 0, 1).reshape(B, C, Ho, Wo)


# ---------------------------------------------------------------------------
# Pure-JAX reference (independent path: builds the 2-D kernel like PyTorch and
# runs a depthwise valid conv via lax.conv_general_dilated).
# ---------------------------------------------------------------------------
def make_gaussian_kernel_2d(kernel_size: int = 3, sigma: float = 0.5):
    sizes = [kernel_size] * 2
    sigmas = [sigma] * 2
    grids = jnp.meshgrid(*[jnp.arange(s, dtype=jnp.float32) for s in sizes],
                         indexing="ij")
    kernel = jnp.array(1.0, dtype=jnp.float32)
    for size, std, mgrid in zip(sizes, sigmas, grids):
        mean = (size - 1) / 2.0
        kernel = kernel * (
            1.0 / (std * math.sqrt(2.0 * math.pi))
            * jnp.exp(-(((mgrid - mean) / (2.0 * std)) ** 2))
        )
    return kernel / jnp.sum(kernel)   # (K, K) float32


def _reference(x, kernel_size: int = 3, sigma: float = 0.5):
    B, C, H, W = x.shape
    w2d = make_gaussian_kernel_2d(kernel_size, sigma).astype(x.dtype)
    w = jnp.broadcast_to(w2d[None, None], (C, 1, kernel_size, kernel_size))
    return jax.lax.conv_general_dilated(
        x, w, window_strides=(1, 1), padding="VALID",
        dimension_numbers=("NCHW", "OIHW", "NCHW"),
        feature_group_count=C,
    )


if __name__ == "__main__":
    key = jax.random.PRNGKey(0)
    k1, k2 = jax.random.split(key)

    # 1) Small NCHW-path check (shapes implied by the module's forward).
    B, C, H, W = 2, 4, 16, 16
    x = jax.random.normal(k1, (B, C, H, W), dtype=jnp.float32)
    out = jax.block_until_ready(gaussian_smoothing(x, kernel_size=3, sigma=0.5))
    ref = _reference(x, 3, 0.5)
    assert out.shape == (B, C, H - 2, W - 2)
    assert jnp.allclose(out, ref, atol=1e-5, rtol=1e-5)

    # 2) Channels-last path (narrow planes, enough of them to fill the lanes).
    B2, C2 = 2, 64
    x2 = jax.random.normal(k2, (B2, C2, H, W), dtype=jnp.float32)
    out2 = jax.block_until_ready(gaussian_smoothing(x2, kernel_size=3, sigma=0.5))
    ref2 = _reference(x2, 3, 0.5)
    assert out2.shape == (B2, C2, H - 2, W - 2)
    assert jnp.allclose(out2, ref2, atol=1e-5, rtol=1e-5)

    # 3) bf16 on the wire, f32 accumulation inside the kernel.
    xb = x.astype(jnp.bfloat16)
    outb = jax.block_until_ready(gaussian_smoothing(xb, kernel_size=3, sigma=0.5))
    refb = _reference(xb.astype(jnp.float32), 3, 0.5)
    assert outb.dtype == jnp.bfloat16
    assert jnp.allclose(outb.astype(jnp.float32), refb, atol=5e-2, rtol=5e-2)

    print("KERNEL_OK")
</pallas_src>

<mosaic_0001>
module attributes {stable_mosaic.version = 11 : i64} {
  func.func @kernel(%arg0: i32, %arg1: memref<4x16x16xf32, #tpu.memory_space<vmem>>, %arg2: memref<4x14x14xf32, #tpu.memory_space<vmem>>) attributes {dimension_semantics = [#tpu.dimension_semantics<parallel>], iteration_bounds = array<i64: 2>, scalar_prefetch = 0 : i64, scratch_operands = 0 : i64, tpu.core_type = #tpu.core_type<tc>, window_params = [{transform_indices = @transform_0, window_bounds = array<i64: 4, 16, 16>}, {transform_indices = @transform_1, window_bounds = array<i64: 4, 14, 14>}]} {
    %c0 = arith.constant 0 : index
    %c0_0 = arith.constant 0 : index
    %c0_1 = arith.constant 0 : index
    %0 = vector.load %arg1[%c0, %c0_0, %c0_1] : memref<4x16x16xf32, #tpu.memory_space<vmem>>, vector<4x16x14xf32>
    %cst = arith.constant 0.211941555 : f32
    %1 = vector.broadcast %cst : f32 to vector<4x16x14xf32>
    %2 = arith.mulf %1, %0 : vector<4x16x14xf32>
    %c0_2 = arith.constant 0 : index
    %c0_3 = arith.constant 0 : index
    %c1 = arith.constant 1 : index
    %3 = vector.load %arg1[%c0_2, %c0_3, %c1] : memref<4x16x16xf32, #tpu.memory_space<vmem>>, vector<4x16x14xf32>
    %cst_4 = arith.constant 0.57611686 : f32
    %4 = vector.broadcast %cst_4 : f32 to vector<4x16x14xf32>
    %5 = arith.mulf %4, %3 : vector<4x16x14xf32>
    %6 = arith.addf %2, %5 : vector<4x16x14xf32>
    %c0_5 = arith.constant 0 : index
    %c0_6 = arith.constant 0 : index
    %c2 = arith.constant 2 : index
    %7 = vector.load %arg1[%c0_5, %c0_6, %c2] : memref<4x16x16xf32, #tpu.memory_space<vmem>>, vector<4x16x14xf32>
    %cst_7 = arith.constant 0.211941555 : f32
    %8 = vector.broadcast %cst_7 : f32 to vector<4x16x14xf32>
    %9 = arith.mulf %8, %7 : vector<4x16x14xf32>
    %10 = arith.addf %6, %9 : vector<4x16x14xf32>
    %11 = vector.extract_strided_slice %10 {offsets = [0, 0, 0], sizes = [4, 14, 14], strides = [1, 1, 1]} : vector<4x16x14xf32> to vector<4x14x14xf32>
    %cst_8 = arith.constant 0.211941555 : f32
    %12 = vector.broadcast %cst_8 : f32 to vector<4x14x14xf32>
    %13 = arith.mulf %12, %11 : vector<4x14x14xf32>
    %14 = vector.extract_strided_slice %10 {offsets = [0, 1, 0], sizes = [4, 14, 14], strides = [1, 1, 1]} : vector<4x16x14xf32> to vector<4x14x14xf32>
    %cst_9 = arith.constant 0.57611686 : f32
    %15 = vector.broadcast %cst_9 : f32 to vector<4x14x14xf32>
    %16 = arith.mulf %15, %14 : vector<4x14x14xf32>
    %17 = arith.addf %13, %16 : vector<4x14x14xf32>
    %18 = vector.extract_strided_slice %10 {offsets = [0, 2, 0], sizes = [4, 14, 14], strides = [1, 1, 1]} : vector<4x16x14xf32> to vector<4x14x14xf32>
    %cst_10 = arith.constant 0.211941555 : f32
    %19 = vector.broadcast %cst_10 : f32 to vector<4x14x14xf32>
    %20 = arith.mulf %19, %18 : vector<4x14x14xf32>
    %21 = arith.addf %17, %20 : vector<4x14x14xf32>
    %c0_11 = arith.constant 0 : index
    %c0_12 = arith.constant 0 : index
    %c0_13 = arith.constant 0 : index
    %22 = vector.load %arg2[%c0_11, %c0_12, %c0_13] : memref<4x14x14xf32, #tpu.memory_space<vmem>>, vector<4x14x14xf32>
    tpu.vector_store %arg2[%c0_11, %c0_12, %c0_13], %21 {strides = array<i32>} : memref<4x14x14xf32, #tpu.memory_space<vmem>>, vector<4x14x14xf32>,
    return
  }
  func.func @transform_0(%arg0: i32) -> (i32, i32, i32) {
    %c0_i32 = arith.constant 0 : i32
    %c0_i32_0 = arith.constant 0 : i32
    %c0_i32_1 = arith.constant 0 : i32
    return %arg0, %c0_i32, %c0_i32_0 : i32, i32, i32
  }
  func.func @transform_1(%arg0: i32) -> (i32, i32, i32) {
    %c0_i32 = arith.constant 0 : i32
    %c0_i32_0 = arith.constant 0 : i32
    %c0_i32_1 = arith.constant 0 : i32
    return %arg0, %c0_i32, %c0_i32_0 : i32, i32, i32
  }
}

</mosaic_0001>

<llo_original>
// kernel: tpu_custom_call.1
$region0: #{tpu_custom_call.1}
  #allocation0 [shape = 'u32[]', space=smem, size = 0x4, offset = 0x4, fixed_abs, tag = 'smem constant byte address 0x4 - core index']
  #allocation1 [shape = 'u32[144,128]{1,0:T(1,128)}', space=vmem, size = 0x12000, scoped, tag = 'internal scratch']
  %s0 = inlined_call_operand.hbm [shape: f32[8,16,16], index: 0, kind: input, shape index: {}]
  %s1 = inlined_call_operand.vmem [shape: f32[8,14,14], index: 1, kind: output, shape index: {}]
  %s2 = sld [smem:[#allocation0]]
  $region41: #{tpu_custom_call.1} parent=0
    _
  %s4 = ssub.s32 1, %s2
  %s5 = scalar_select 0, %s4, %s2
  $region1: #{tpu_custom_call.1} parent=0
    #allocation2 [shape = 'u8[65536]{0}', space=vmem, size = 0x10000, scoped, tag = 'input window, operand 0']
    #allocation3 [shape = 's32[2]{0}', space=sflag, size = 0x8, scoped, tag = 'scoped memory for tpu_custom_call.1']
    %6 = vsyncpa [#allocation3], 0
    %s7 = scalar_lea.sflag [#allocation3], 1
    %8 = vsyncpa %s7, 0
    loop: start=0, step=1, limit=4
    $region2: #{tpu_custom_call.1} parent=1 // loop_pre_header
      _
    $region3: #{tpu_custom_call.1} parent=1 // loop_header
      %s10 = sphi 0, %s14
      %p11 = scmp.ge.s32.totalorder %s10, 4
      %s20 = sphi 0, %s22
      %s23 = sphi 0, %s20
      %s24 = sphi 0, %s23
      %s40 = sphi 0, %s24
      %s46 = sphi 0, %s48
      %s49 = sphi 0, %s46
      %s50 = sphi 0, %s49
      %s66 = sphi 0, %s50
    $region4: #{tpu_custom_call.1} parent=1 // loop_header_branch
      %13 = sbr.rel (%p11) target = $region8
    $region5: #{tpu_custom_call.1} parent=1 // loop_body
      %s15 = ssub.s32 %s10, 1
      %s16 = ssub.s32 %s10, 2
      %s17 = sadd.s32 %s10, 1
      %s18 = ssub.s32 %s10, %s17
      %p19 = scmp.eq.s32.totalorder %s18, 0
      %s21 = sadd.s32 %s20, 1
      %s22 = scalar_select %p19, %s20, %s21
      %p25 = pneg %p19
      %p26 = scmp.eq.s32.totalorder %s10, 1
      %p27 = por %p25, %p26
      %p28 = scmp.ne.s32.totalorder %s20, %s23
      %p29 = scmp.eq.s32.totalorder %s10, 0
      %p30 = por %p28, %p29
      %p31 = scmp.ne.s32.totalorder %s20, %s23
      %p32 = scmp.eq.s32.totalorder %s15, 1
      %p33 = por %p31, %p32
      %p34 = scmp.ne.s32.totalorder %s23, %s24
      %p35 = scmp.eq.s32.totalorder %s15, 0
      %p36 = por %p34, %p35
      %p37 = scmp.ne.s32.totalorder %s23, %s24
      %p38 = scmp.eq.s32.totalorder %s16, 1
      %p39 = por %p37, %p38
      %p41 = scmp.ne.s32.totalorder %s24, %s40
      %p42 = scmp.eq.s32.totalorder %s16, 0
      %p43 = por %p41, %p42
      %s44 = ssub.s32 %s10, %s17
      %p45 = scmp.eq.s32.totalorder %s44, 0
      %s47 = sadd.s32 %s46, 1
      %s48 = scalar_select %p45, %s46, %s47
      %p51 = pneg %p45
      %p52 = scmp.eq.s32.totalorder %s10, 1
      %p53 = por %p51, %p52
      %p54 = scmp.ne.s32.totalorder %s46, %s49
      %p55 = scmp.eq.s32.totalorder %s10, 0
      %p56 = por %p54, %p55
      %p57 = scmp.ne.s32.totalorder %s46, %s49
      %p58 = scmp.eq.s32.totalorder %s15, 1
      %p59 = por %p57, %p58
      %p60 = scmp.ne.s32.totalorder %s49, %s50
      %p61 = scmp.eq.s32.totalorder %s15, 0
      %p62 = por %p60, %p61
      %p63 = scmp.ne.s32.totalorder %s49, %s50
      %p64 = scmp.eq.s32.totalorder %s16, 1
      %p65 = por %p63, %p64
      %p67 = scmp.ne.s32.totalorder %s50, %s66
      %p68 = scmp.eq.s32.totalorder %s16, 0
      %p69 = por %p67, %p68
      %p70 = scmp.le.s32.totalorder 1, %s10
      %p71 = scmp.lt.s32.totalorder %s10, 3
      %p72 = pnand %p70, %p71
      %p73 = pneg %p72
      // Predicated region
      $region9: #{tpu_custom_call.1} parent=5 // pred_check
        _
      $region10: #{tpu_custom_call.1} parent=5 // pred_check_branch
        %75 = sbr.rel (%p72) target = $region12
      $region11: #{tpu_custom_call.1} parent=5 // pred_region
        %s76 = ssub.s32 %s10, 1
      $region12: #{tpu_custom_call.1} parent=5 // pred_fallthru
        _
      %p77 = scmp.lt.s32.totalorder %s10, 2
      // Predicated region
      $region13: #{tpu_custom_call.1} parent=5 // pred_check
        %p78 = pneg %p77
      $region14: #{tpu_custom_call.1} parent=5 // pred_check_branch
        %80 = sbr.rel (%p78) target = $region16
      $region15: #{tpu_custom_call.1} parent=5 // pred_region
        // Predicated region
        $region17: #{tpu_custom_call.1} parent=15 // pred_check
          %p81 = pneg %p30
        $region18: #{tpu_custom_call.1} parent=15 // pred_check_branch
          %83 = sbr.rel (%p81) target = $region20
        $region19: #{tpu_custom_call.1} parent=15 // pred_region
          %s84 = sand.u32 %s20, 1
          %s85 = scalar_lea.sflag [#allocation3], %s84
          %s86 = sand.u32 %s20, 1
          %s87 = smul.addr %s86, 64
          %s88 = scalar_lea.vmem [#allocation2], %s87
          %s89 = smul.u32 4, %s10
          %s91 = ssub.s32 1024, 1024
          %92 = vsyncadd %s85, %s91
          %s93 = smul.addr %s89, 2
          %s94 = smul.addr %s93, 128
          %s95 = scalar_lea.hbm %s0, %s94
          %s96 = sshll.u32 %s88, 4
          %s97 = int_to_ptr.vmem [resolvable:$true] %s96
          %102 = dma.hbm_to_vmem [thread:$0]  %s95, 1024, %s97, %s85, 128, 128, 8
        $region20: #{tpu_custom_call.1} parent=15 // pred_fallthru
          _
      $region16: #{tpu_custom_call.1} parent=5 // pred_fallthru
        _
      %p103 = scmp.le.s32.totalorder 1, %s10
      %p104 = scmp.lt.s32.totalorder %s10, 3
      %p105 = pnand %p103, %p104
      %p106 = pneg %p105
      // Predicated region
      $region21: #{tpu_custom_call.1} parent=5 // pred_check
        _
      $region22: #{tpu_custom_call.1} parent=5 // pred_check_branch
        %108 = sbr.rel (%p105) target = $region24
      $region23: #{tpu_custom_call.1} parent=5 // pred_region
        %s109 = ssub.s32 %s10, 1
        %s110 = sand.u32 %s23, 1
        %s111 = scalar_lea.sflag [#allocation3], %s110
        %s112 = sand.u32 %s23, 1
        %s113 = smul.addr %s112, 64
        %s114 = scalar_lea.vmem [#allocation2], %s113
        // Predicated region
        $region25: #{tpu_custom_call.1} parent=23 // pred_check
          %p115 = pneg %p36
        $region26: #{tpu_custom_call.1} parent=23 // pred_check_branch
          %117 = sbr.rel (%p115) target = $region28
        $region27: #{tpu_custom_call.1} parent=23 // pred_region
          %118 = dma.done %s111, 1024
        $region28: #{tpu_custom_call.1} parent=23 // pred_fallthru
          _
        %s119 = sand.u32 %s23, 1
        %s120 = scalar_lea.sflag [#allocation3], %s119
        %s121 = sand.u32 %s23, 1
        %s122 = smul.addr %s121, 64
        %s123 = scalar_lea.vmem [#allocation2], %s122
        %p124 = pneg %p36
        %p125 = pneg %p33
        %p126 = pneg %p62
        %p127 = pneg %p59
        %s128 = smul.u32 4, %s15
        %p129 = scmp.lt.s32.totalorder %s128, 7
        %s130 = scalar_select %p129, %s128, 7
        %s131 = smul.addr %s130, 2
        %s132 = smul.addr %s131, 8
        %s133 = scalar_lea.vmem %s1, %s132
        %s134 = smul.u32 4, %s15
        %s135 = smul.u32 4, %s15
        %p136 = scmp.lt.s32.totalorder %s135, 7
        %s137 = scalar_select %p136, %s135, 7
        %s138 = smul.addr %s137, 2
        %s139 = smul.addr %s138, 8
        %s140 = scalar_lea.vmem %s1, %s139
        %s141 = smul.u32 4, %s15
        %v142 = vld [vmem:[%s114] sm:$0xff]
        %v143 = vld [vmem:[%s114 + $0x8] sm:$0xff]
        %v144 = vld [vmem:[%s114 + $0x10] sm:$0xff]
        %v145 = vld [vmem:[%s114 + $0x18] sm:$0xff]
        %v146 = vld [vmem:[%s114 + $0x20] sm:$0xff]
        %v147 = vld [vmem:[%s114 + $0x28] sm:$0xff]
        %v148 = vld [vmem:[%s114 + $0x30] sm:$0xff]
        %v149 = vld [vmem:[%s114 + $0x38] sm:$0xff]
        %v150 = vmul.f32 %v142, 0.21194156
        %v151 = vmul.f32 %v143, 0.21194156
        %v152 = vmul.f32 %v144, 0.21194156
        %v153 = vmul.f32 %v145, 0.21194156
        %v154 = vmul.f32 %v146, 0.21194156
        %v155 = vmul.f32 %v147, 0.21194156
        %v156 = vmul.f32 %v148, 0.21194156
        %v157 = vmul.f32 %v149, 0.21194156
        %v158 = vmul.f32 %v142, 0.57611686
        %v159 = vmul.f32 %v143, 0.57611686
        %v160 = vmul.f32 %v144, 0.57611686
        %v161 = vmul.f32 %v145, 0.57611686
        %v162 = vmul.f32 %v146, 0.57611686
        %v163 = vmul.f32 %v147, 0.57611686
        %v164 = vmul.f32 %v148, 0.57611686
        %v165 = vmul.f32 %v149, 0.57611686
        %174 = vrot.lane.b32.xlu0 %v158, 127
        %v175 = vpop.permute.xlu0 %174
        %176 = vrot.lane.b32.xlu0 %v159, 127
        %v177 = vpop.permute.xlu0 %176
        %178 = vrot.lane.b32.xlu0 %v160, 127
        %v179 = vpop.permute.xlu0 %178
        %180 = vrot.lane.b32.xlu0 %v161, 127
        %v181 = vpop.permute.xlu0 %180
        %182 = vrot.lane.b32.xlu0 %v162, 127
        %v183 = vpop.permute.xlu0 %182
        %184 = vrot.lane.b32.xlu0 %v163, 127
        %v185 = vpop.permute.xlu0 %184
        %186 = vrot.lane.b32.xlu0 %v164, 127
        %v187 = vpop.permute.xlu0 %186
        %188 = vrot.lane.b32.xlu0 %v165, 127
        %v189 = vpop.permute.xlu0 %188
        %v198 = vadd.f32 %v150, %v175
        %v199 = vadd.f32 %v151, %v177
        %v200 = vadd.f32 %v152, %v179
        %v201 = vadd.f32 %v153, %v181
        %v202 = vadd.f32 %v154, %v183
        %v203 = vadd.f32 %v155, %v185
        %v204 = vadd.f32 %v156, %v187
        %v205 = vadd.f32 %v157, %v189
        %214 = vrot.lane.b32.xlu0 %v150, 126
        %v215 = vpop.permute.xlu0 %214
        %216 = vrot.lane.b32.xlu0 %v151, 126
        %v217 = vpop.permute.xlu0 %216
        %218 = vrot.lane.b32.xlu0 %v152, 126
        %v219 = vpop.permute.xlu0 %218
        %220 = vrot.lane.b32.xlu0 %v153, 126
        %v221 = vpop.permute.xlu0 %220
        %222 = vrot.lane.b32.xlu0 %v154, 126
        %v223 = vpop.permute.xlu0 %222
        %224 = vrot.lane.b32.xlu0 %v155, 126
        %v225 = vpop.permute.xlu0 %224
        %226 = vrot.lane.b32.xlu0 %v156, 126
        %v227 = vpop.permute.xlu0 %226
        %228 = vrot.lane.b32.xlu0 %v157, 126
        %v229 = vpop.permute.xlu0 %228
        %v238 = vadd.f32 %v198, %v215
        %v239 = vadd.f32 %v199, %v217
        %v240 = vadd.f32 %v200, %v219
        %v241 = vadd.f32 %v201, %v221
        %v242 = vadd.f32 %v202, %v223
        %v243 = vadd.f32 %v203, %v225
        %v244 = vadd.f32 %v204, %v227
        %v245 = vadd.f32 %v205, %v229
        %v246 = vmul.f32 %v238, 0.21194156
        %v247 = vmul.f32 %v239, 0.21194156
        %v248 = vmul.f32 %v240, 0.21194156
        %v249 = vmul.f32 %v241, 0.21194156
        %v250 = vmul.f32 %v242, 0.21194156
        %v251 = vmul.f32 %v243, 0.21194156
        %v252 = vmul.f32 %v244, 0.21194156
        %v253 = vmul.f32 %v245, 0.21194156
        %v254 = vmul.f32 %v238, 0.57611686
        %v255 = vmul.f32 %v239, 0.57611686
        %v256 = vmul.f32 %v240, 0.57611686
        %v257 = vmul.f32 %v241, 0.57611686
        %v258 = vmul.f32 %v242, 0.57611686
        %v259 = vmul.f32 %v243, 0.57611686
        %v260 = vmul.f32 %v244, 0.57611686
        %v261 = vmul.f32 %v245, 0.57611686
        %vm270 = vcmask 1046528
        %v271 = vrot.slane %v254, 1
        %v272 = vrot.slane %v255, 1
        %v273 = vsel %vm270, %v271, %v272
        %v274 = vrot.slane %v256, 1
        %v275 = vrot.slane %v257, 1
        %v276 = vsel %vm270, %v274, %v275
        %v277 = vrot.slane %v258, 1
        %v278 = vrot.slane %v259, 1
        %v279 = vsel %vm270, %v277, %v278
        %v280 = vrot.slane %v260, 1
        %v281 = vrot.slane %v261, 1
        %v282 = vsel %vm270, %v280, %v281
        %v291 = vadd.f32 %v246, %v273
        %v292 = vadd.f32 %v247, %v272
        %v293 = vadd.f32 %v248, %v276
        %v294 = vadd.f32 %v249, %v275
        %v295 = vadd.f32 %v250, %v279
        %v296 = vadd.f32 %v251, %v278
        %v297 = vadd.f32 %v252, %v282
        %v298 = vadd.f32 %v253, %v281
        %vm307 = vcmask 1045504
        %v308 = vrot.slane %v246, 2
        %v309 = vrot.slane %v247, 2
        %v310 = vsel %vm307, %v308, %v309
        %v311 = vrot.slane %v248, 2
        %v312 = vrot.slane %v249, 2
        %v313 = vsel %vm307, %v311, %v312
        %v314 = vrot.slane %v250, 2
        %v315 = vrot.slane %v251, 2
        %v316 = vsel %vm307, %v314, %v315
        %v317 = vrot.slane %v252, 2
        %v318 = vrot.slane %v253, 2
        %v319 = vsel %vm307, %v317, %v318
        %v328 = vadd.f32 %v291, %v310
        %v329 = vadd.f32 %v292, %v309
        %v330 = vadd.f32 %v293, %v313
        %v331 = vadd.f32 %v294, %v312
        %v332 = vadd.f32 %v295, %v316
        %v333 = vadd.f32 %v296, %v315
        %v334 = vadd.f32 %v297, %v319
        %v335 = vadd.f32 %v298, %v318
        %vm336 = vcmask 113664
        %337 = vst.msk [vmem:[%s140] sm:$0xff] %vm336, %v328
        %vm338 = vcmask 111616
        %339 = vst.msk [vmem:[%s140 + $0x8] sm:$0x3f] %vm338, %v329
        %340 = vst.msk [vmem:[%s140 + $0x10] sm:$0xff] %vm336, %v330
        %341 = vst.msk [vmem:[%s140 + $0x18] sm:$0x3f] %vm338, %v331
        %342 = vst.msk [vmem:[%s140 + $0x20] sm:$0xff] %vm336, %v332
        %343 = vst.msk [vmem:[%s140 + $0x28] sm:$0x3f] %vm338, %v333
        %344 = vst.msk [vmem:[%s140 + $0x30] sm:$0xff] %vm336, %v334
        %345 = vst.msk [vmem:[%s140 + $0x38] sm:$0x3f] %vm338, %v335
        %s346 = smul.u32 4, %s15
        %p347 = scmp.lt.s32.totalorder %s346, 7
        %s348 = scalar_select %p347, %s346, 7
        %s349 = smul.addr %s348, 2
        %s350 = smul.addr %s349, 8
        %s351 = scalar_lea.vmem %s1, %s350
        // Predicated region
        $region29: #{tpu_custom_call.1} parent=23 // pred_check
          %p352 = pneg %p59
        $region30: #{tpu_custom_call.1} parent=23 // pred_check_branch
          %354 = sbr.rel (%p352) target = $region32
        $region31: #{tpu_custom_call.1} parent=23 // pred_region
          %s355 = smul.u32 4, %s15
        $region32: #{tpu_custom_call.1} parent=23 // pred_fallthru
          _
      $region24: #{tpu_custom_call.1} parent=5 // pred_fallthru
        _
      %p356 = scmp.le.s32.totalorder 2, %s10
      // Predicated region
      $region33: #{tpu_custom_call.1} parent=5 // pred_check
        %p357 = pneg %p356
      $region34: #{tpu_custom_call.1} parent=5 // pred_check_branch
        %359 = sbr.rel (%p357) target = $region36
      $region35: #{tpu_custom_call.1} parent=5 // pred_region
        %s360 = ssub.s32 %s10, 2
        // Predicated region
        $region37: #{tpu_custom_call.1} parent=35 // pred_check
          %p361 = pneg %p65
        $region38: #{tpu_custom_call.1} parent=35 // pred_check_branch
          %363 = sbr.rel (%p361) target = $region40
        $region39: #{tpu_custom_call.1} parent=35 // pred_region
          %s364 = smul.u32 4, %s16
          %p365 = scmp.lt.s32.totalorder %s364, 7
          %s366 = scalar_select %p365, %s364, 7
          %s367 = smul.addr %s366, 2
          %s368 = smul.addr %s367, 8
          %s369 = scalar_lea.vmem %s1, %s368
        $region40: #{tpu_custom_call.1} parent=35 // pred_fallthru
          _
      $region36: #{tpu_custom_call.1} parent=5 // pred_fallthru
        _
    $region6: #{tpu_custom_call.1} parent=1 // loop_footer
      %s14 = sadd.s32 1, %s10
    $region7: #{tpu_custom_call.1} parent=1 // loop_footer_branch
      %9 = sbr.rel target = $region3
    $region8: #{tpu_custom_call.1} parent=1 // loop_exit
      _
    %370 = vsyncpa [#allocation3], 1
    %s371 = scalar_lea.sflag [#allocation3], 1
    %372 = vsyncpa %s371, 1

</llo_original>
